<compile_context>
chip_gen: v7x
topology: tpu7x:2x2x1
jax: 0.10.0
libtpu: 0.0.40
codegen_flags: <defaults>
</compile_context>

<pallas_src>
import functools

import jax
import jax.numpy as jnp
from jax.experimental import pallas as pl
from jax.experimental.pallas import tpu as pltpu


def _round_up(x, m):
    return ((x + m - 1) // m) * m


def _min_sublane(dtype):
    """Minimum sublane tile for the dtype: 8 for 4-byte, 16 for 2-byte, 32 for 1-byte."""
    itemsize = jnp.dtype(dtype).itemsize
    return max(8, 32 // max(1, itemsize))


def _vmem_plan():
    """Per-generation (input-buffer budget, scoped vmem limit) in bytes."""
    budget, limit = 24 * 1024 * 1024, 32 * 1024 * 1024  # safe on every generation
    try:
        info = pltpu.get_tpu_info()
    except Exception:
        return budget, limit
    vmem = int(getattr(info, "vmem_capacity_bytes", 0) or 0)
    name = (str(getattr(info, "chip_version", "")) + str(getattr(info, "name", ""))).lower()
    if vmem >= 100 * 1024 * 1024 and "7" not in name:
        # v5e / v6e: 128 MiB physical VMEM -> big tiles, fewer grid steps.
        return 96 * 1024 * 1024, 110 * 1024 * 1024
    if vmem >= 48 * 1024 * 1024:
        # v7x: 64 MiB per TensorCore -> keep 3 inputs x 2 buffers well under it.
        return 40 * 1024 * 1024, 56 * 1024 * 1024
    return budget, limit


def _choose_block_rows(batch, dim, dtype, vmem_budget_bytes):
    """Largest sublane-aligned row tile s.t. 3 inputs x 2 pipeline buffers fit the budget,
    capped so large batches still yield >= ~4 grid steps (v7x 2-TC sharding)."""
    itemsize = jnp.dtype(dtype).itemsize
    sub = _min_sublane(dtype)
    rows = vmem_budget_bytes // (6 * dim * itemsize)
    rows = max(sub, (rows // sub) * sub)
    rows = min(rows, max(sub, _round_up(pl.cdiv(batch, 4), sub)))
    return min(rows, _round_up(batch, sub))


def _triplet_loss_kernel(a_ref, p_ref, n_ref, out_ref, *, margin, batch, block_rows):
    # Native-dtype DMA; cast to f32 on the VPU (free filler under the DMA, keeps
    # accumulation in f32 and stays off v5e's missing-bf16 VPU path).
    a = a_ref[...].astype(jnp.float32)
    p = p_ref[...].astype(jnp.float32)
    n = n_ref[...].astype(jnp.float32)

    dp = a - p
    dn = a - n
    # Fused: single cross-lane reduction instead of two separate dp/dn sums.
    per_row = jnp.sum(dp * dp - dn * dn, axis=1, keepdims=True)  # (block_rows, 1)

    # losses = relu(dist_pos - dist_neg + margin)
    losses = jnp.maximum(per_row + jnp.float32(margin), 0.0)

    # Mask rows past the real batch (the last block may overhang; its data is
    # unspecified).  This select runs BEFORE the block sum so garbage/NaN rows
    # cannot contribute.
    row = (pl.program_id(0) * block_rows
           + jax.lax.broadcasted_iota(jnp.int32, losses.shape, 0))
    losses = jnp.where(row < batch, losses, 0.0)

    block_sum = jnp.sum(losses)
    # Lane-dense (1, 8, 128) store of the broadcast partial -> unmasked vst.
    out_ref[...] = jnp.broadcast_to(block_sum, out_ref.shape)


def triplet_loss(anchor, positive, negative, margin, *, block_rows=None):
    """Pallas TPU implementation of TripletLoss.forward. Returns a scalar."""
    assert anchor.shape == positive.shape == negative.shape
    assert anchor.ndim == 2
    assert anchor.dtype == positive.dtype == negative.dtype
    B, D = anchor.shape
    dtype = anchor.dtype
    itemsize = jnp.dtype(dtype).itemsize

    vmem_budget, vmem_limit = _vmem_plan()
    if block_rows is None:
        block_rows = _choose_block_rows(B, D, dtype, vmem_budget)
    num_blocks = pl.cdiv(B, block_rows)

    kernel = functools.partial(
        _triplet_loss_kernel,
        margin=float(margin), batch=B, block_rows=block_rows)

    in_spec = pl.BlockSpec((block_rows, D), lambda i: (i, 0))

    partials = pl.pallas_call(
        kernel,
        out_shape=jax.ShapeDtypeStruct((num_blocks, 8, 128), jnp.float32),
        grid=(num_blocks,),
        in_specs=[in_spec, in_spec, in_spec],
        out_specs=pl.BlockSpec((1, 8, 128), lambda i: (i, 0, 0)),
        compiler_params=pltpu.CompilerParams(
            dimension_semantics=("parallel",),
            vmem_limit_bytes=vmem_limit),
        cost_estimate=pl.CostEstimate(
            flops=6 * B * D,
            transcendentals=0,
            bytes_accessed=3 * B * D * itemsize + num_blocks * 8 * 128 * 4),
    )(anchor, positive, negative)

    # Finish the mean on the tiny (num_blocks,) vector of partials; multiply by
    # a trace-time 1/B constant instead of dividing.
    return jnp.sum(partials[:, 0, 0]) * jnp.float32(1.0 / B)


def triplet_loss_ref(anchor, positive, negative, margin):
    # Matches the PyTorch module exactly: squared L2 distances, no sqrt.
    a = anchor.astype(jnp.float32)
    p = positive.astype(jnp.float32)
    n = negative.astype(jnp.float32)
    dp = jnp.sum((a - p) ** 2, axis=1)
    dn = jnp.sum((a - n) ** 2, axis=1)
    return jnp.mean(jnp.maximum(dp - dn + margin, 0.0))


if __name__ == "__main__":
    key = jax.random.PRNGKey(0)
    margin = 0.5  # module __init__ arg, chosen deterministically in-script

    # Case 1: single-block path (B=8, D=128), f32.
    k_a, k_p, k_n, key = jax.random.split(key, 4)
    B, D = 8, 128
    a = jax.random.normal(k_a, (B, D), dtype=jnp.float32)
    p = jax.random.normal(k_p, (B, D), dtype=jnp.float32)
    n = jax.random.normal(k_n, (B, D), dtype=jnp.float32)
    out = jax.block_until_ready(triplet_loss(a, p, n, margin))
    ref = triplet_loss_ref(a, p, n, margin)
    assert jnp.allclose(out, ref, rtol=1e-5, atol=1e-5), (out, ref)

    # Case 2: multi-block grid with an overhanging (masked) last tile (B=20, D=256), f32.
    k_a, k_p, k_n, key = jax.random.split(key, 4)
    B, D = 20, 256
    a = jax.random.normal(k_a, (B, D), dtype=jnp.float32)
    p = jax.random.normal(k_p, (B, D), dtype=jnp.float32)
    n = jax.random.normal(k_n, (B, D), dtype=jnp.float32)
    out = jax.block_until_ready(triplet_loss(a, p, n, margin, block_rows=8))
    ref = triplet_loss_ref(a, p, n, margin)
    assert jnp.allclose(out, ref, rtol=1e-5, atol=1e-5), (out, ref)

    # Case 3: native bf16 streaming path (no wrapper upcast), auto block_rows
    # (16-row sublane tile for bf16) with an overhanging masked last tile.
    a_bf = a.astype(jnp.bfloat16)
    p_bf = p.astype(jnp.bfloat16)
    n_bf = n.astype(jnp.bfloat16)
    out_bf = jax.block_until_ready(triplet_loss(a_bf, p_bf, n_bf, margin))
    ref_bf = triplet_loss_ref(a_bf, p_bf, n_bf, margin)
    assert jnp.allclose(out_bf, ref_bf, rtol=1e-4, atol=1e-4), (out_bf, ref_bf)

    print("KERNEL_OK")
</pallas_src>

<mosaic_0001>
module attributes {stable_mosaic.version = 11 : i64} {
  func.func @_triplet_loss_kernel(%arg0: i32, %arg1: memref<8x128xf32, #tpu.memory_space<vmem>>, %arg2: memref<8x128xf32, #tpu.memory_space<vmem>>, %arg3: memref<8x128xf32, #tpu.memory_space<vmem>>, %arg4: memref<1x8x128xf32, #tpu.memory_space<vmem>>) attributes {dimension_semantics = [#tpu.dimension_semantics<parallel>], iteration_bounds = array<i64: 1>, scalar_prefetch = 0 : i64, scratch_operands = 0 : i64, tpu.core_type = #tpu.core_type<tc>, window_params = [{transform_indices = @transform_0, window_bounds = array<i64: 8, 128>}, {transform_indices = @transform_1, window_bounds = array<i64: 8, 128>}, {transform_indices = @transform_2, window_bounds = array<i64: 8, 128>}, {transform_indices = @transform_3, window_bounds = array<i64: 1, 8, 128>}]} {
    %c0 = arith.constant 0 : index
    %c0_0 = arith.constant 0 : index
    %0 = vector.load %arg1[%c0, %c0_0] : memref<8x128xf32, #tpu.memory_space<vmem>>, vector<8x128xf32>
    %c0_1 = arith.constant 0 : index
    %c0_2 = arith.constant 0 : index
    %1 = vector.load %arg2[%c0_1, %c0_2] : memref<8x128xf32, #tpu.memory_space<vmem>>, vector<8x128xf32>
    %c0_3 = arith.constant 0 : index
    %c0_4 = arith.constant 0 : index
    %2 = vector.load %arg3[%c0_3, %c0_4] : memref<8x128xf32, #tpu.memory_space<vmem>>, vector<8x128xf32>
    %3 = arith.subf %0, %1 : vector<8x128xf32>
    %4 = arith.subf %0, %2 : vector<8x128xf32>
    %5 = arith.mulf %3, %3 : vector<8x128xf32>
    %6 = arith.mulf %4, %4 : vector<8x128xf32>
    %7 = arith.subf %5, %6 : vector<8x128xf32>
    %cst = arith.constant dense<0.000000e+00> : vector<8xf32>
    %8 = vector.multi_reduction <add>, %7, %cst [1] : vector<8x128xf32> to vector<8xf32>
    %9 = vector.shape_cast %8 : vector<8xf32> to vector<8x1xf32>
    %cst_5 = arith.constant 5.000000e-01 : f32
    %10 = vector.broadcast %cst_5 : f32 to vector<8x1xf32>
    %11 = arith.addf %9, %10 : vector<8x1xf32>
    %cst_6 = arith.constant 0.000000e+00 : f32
    %12 = vector.broadcast %cst_6 : f32 to vector<8x1xf32>
    %13 = arith.maximumf %11, %12 : vector<8x1xf32>
    %c8_i32 = arith.constant 8 : i32
    %14 = arith.muli %arg0, %c8_i32 : i32
    %15 = tpu.iota {dimensions = array<i32: 0>} : vector<8x1xi32>
    %16 = vector.broadcast %14 : i32 to vector<8x1xi32>
    %17 = arith.addi %16, %15 : vector<8x1xi32>
    %c8_i32_7 = arith.constant 8 : i32
    %18 = vector.broadcast %c8_i32_7 : i32 to vector<8x1xi32>
    %19 = arith.cmpi slt, %17, %18 : vector<8x1xi32>
    %cst_8 = arith.constant 0.000000e+00 : f32
    %20 = vector.broadcast %cst_8 : f32 to vector<8x1xf32>
    %21 = arith.select %19, %13, %20 : vector<8x1xi1>, vector<8x1xf32>
    %22 = vector.shape_cast %21 : vector<8x1xf32> to vector<1x8x1xf32>
    %cst_9 = arith.constant dense<0.000000e+00> : vector<1xf32>
    %23 = vector.multi_reduction <add>, %22, %cst_9 [1, 2] : vector<1x8x1xf32> to vector<1xf32>
    %24 = vector.shape_cast %23 : vector<1xf32> to vector<1x1x1xf32>
    %25 = vector.extract %24[0, 0, 0] : f32 from vector<1x1x1xf32>
    %26 = vector.broadcast %25 : f32 to vector<1x8x128xf32>
    %c0_10 = arith.constant 0 : index
    %c0_11 = arith.constant 0 : index
    %c0_12 = arith.constant 0 : index
    %27 = vector.load %arg4[%c0_10, %c0_11, %c0_12] : memref<1x8x128xf32, #tpu.memory_space<vmem>>, vector<1x8x128xf32>
    tpu.vector_store %arg4[%c0_10, %c0_11, %c0_12], %26 {strides = array<i32>} : memref<1x8x128xf32, #tpu.memory_space<vmem>>, vector<1x8x128xf32>,
    return
  }
  func.func @transform_0(%arg0: i32) -> (i32, i32) {
    %c0_i32 = arith.constant 0 : i32
    %c0_i32_0 = arith.constant 0 : i32
    return %arg0, %c0_i32 : i32, i32
  }
  func.func @transform_1(%arg0: i32) -> (i32, i32) {
    %c0_i32 = arith.constant 0 : i32
    %c0_i32_0 = arith.constant 0 : i32
    return %arg0, %c0_i32 : i32, i32
  }
  func.func @transform_2(%arg0: i32) -> (i32, i32) {
    %c0_i32 = arith.constant 0 : i32
    %c0_i32_0 = arith.constant 0 : i32
    return %arg0, %c0_i32 : i32, i32
  }
  func.func @transform_3(%arg0: i32) -> (i32, i32, i32) {
    %c0_i32 = arith.constant 0 : i32
    %c0_i32_0 = arith.constant 0 : i32
    %c0_i32_1 = arith.constant 0 : i32
    return %arg0, %c0_i32, %c0_i32_0 : i32, i32, i32
  }
}

</mosaic_0001>

<llo_original>
// kernel: tpu_custom_call.1
$region0: #{tpu_custom_call.1}
  #allocation0 [shape = 'u32[]', space=smem, size = 0x4, offset = 0x4, fixed_abs, tag = 'smem constant byte address 0x4 - core index']
  #allocation1 [shape = 'u32[144,128]{1,0:T(1,128)}', space=vmem, size = 0x12000, scoped, tag = 'internal scratch']
  %s0 = inlined_call_operand.hbm [shape: f32[8,128], index: 0, kind: input, shape index: {}]
  %s1 = inlined_call_operand.hbm [shape: f32[8,128], index: 1, kind: input, shape index: {}]
  %s2 = inlined_call_operand.hbm [shape: f32[8,128], index: 2, kind: input, shape index: {}]
  %s3 = inlined_call_operand.hbm [shape: f32[1,8,128], index: 3, kind: output, shape index: {}]
  %s4 = sld [smem:[#allocation0]]
  $region34: #{tpu_custom_call.1} parent=0
    _
  %s6 = ssub.s32 1, %s4
  %s7 = scalar_select 0, %s6, %s4
  $region1: #{tpu_custom_call.1} parent=0
    #allocation2 [shape = 'u8[4096]{0}', space=vmem, size = 0x1000, scoped, tag = 'input window, operand 0, single buffered']
    #allocation3 [shape = 's32[1]{0}', space=sflag, size = 0x4, scoped, tag = 'scoped memory for tpu_custom_call.1']
    #allocation4 [shape = 's32[1]{0}', space=sflag, size = 0x4, scoped, tag = 'scoped memory for tpu_custom_call.1']
    #allocation5 [shape = 'u8[4096]{0}', space=vmem, size = 0x1000, scoped, tag = 'input window, operand 1, single buffered']
    #allocation6 [shape = 's32[1]{0}', space=sflag, size = 0x4, scoped, tag = 'scoped memory for tpu_custom_call.1']
    #allocation7 [shape = 'u8[4096]{0}', space=vmem, size = 0x1000, scoped, tag = 'input window, operand 2, single buffered']
    #allocation8 [shape = 'u8[4096]{0}', space=vmem, size = 0x1000, scoped, tag = 'output window, operand 0, single buffered']
    %8 = vsyncpa [#allocation3], 0
    %9 = vsyncpa [#allocation6], 0
    %10 = vsyncpa [#allocation4], 0
    // Predicated region
    $region2: #{tpu_custom_call.1} parent=1 // pred_check
      _
    $region3: #{tpu_custom_call.1} parent=1 // pred_check_branch
      %12 = sbr.rel (0) target = $region5
    $region4: #{tpu_custom_call.1} parent=1 // pred_region
      %s14 = ssub.s32 128, 128
      %15 = vsyncadd [#allocation3], %s14
      %s17 = sshll.u32 [#allocation2], 4
      %s18 = int_to_ptr.vmem [resolvable:$true] %s17
      %20 = dma.hbm_to_vmem [thread:$0]  %s0, 128, %s18, [#allocation3]
    $region5: #{tpu_custom_call.1} parent=1 // pred_fallthru
      _
    // Predicated region
    $region6: #{tpu_custom_call.1} parent=1 // pred_check
      _
    $region7: #{tpu_custom_call.1} parent=1 // pred_check_branch
      %22 = sbr.rel (0) target = $region9
    $region8: #{tpu_custom_call.1} parent=1 // pred_region
      %s24 = ssub.s32 128, 128
      %25 = vsyncadd [#allocation6], %s24
      %s27 = sshll.u32 [#allocation5], 4
      %s28 = int_to_ptr.vmem [resolvable:$true] %s27
      %30 = dma.hbm_to_vmem [thread:$0]  %s1, 128, %s28, [#allocation6]
    $region9: #{tpu_custom_call.1} parent=1 // pred_fallthru
      _
    // Predicated region
    $region10: #{tpu_custom_call.1} parent=1 // pred_check
      _
    $region11: #{tpu_custom_call.1} parent=1 // pred_check_branch
      %32 = sbr.rel (0) target = $region13
    $region12: #{tpu_custom_call.1} parent=1 // pred_region
      %s34 = ssub.s32 128, 128
      %35 = vsyncadd [#allocation6], %s34
      %s37 = sshll.u32 [#allocation7], 4
      %s38 = int_to_ptr.vmem [resolvable:$true] %s37
      %40 = dma.hbm_to_vmem [thread:$0]  %s2, 128, %s38, [#allocation6]
    $region13: #{tpu_custom_call.1} parent=1 // pred_fallthru
      _
    // Predicated region
    $region14: #{tpu_custom_call.1} parent=1 // pred_check
      _
    $region15: #{tpu_custom_call.1} parent=1 // pred_check_branch
      %42 = sbr.rel (0) target = $region17
    $region16: #{tpu_custom_call.1} parent=1 // pred_region
      %43 = dma.done [#allocation3], 128
    $region17: #{tpu_custom_call.1} parent=1 // pred_fallthru
      _
    // Predicated region
    $region18: #{tpu_custom_call.1} parent=1 // pred_check
      _
    $region19: #{tpu_custom_call.1} parent=1 // pred_check_branch
      %45 = sbr.rel (0) target = $region21
    $region20: #{tpu_custom_call.1} parent=1 // pred_region
      %46 = dma.done [#allocation6], 128
    $region21: #{tpu_custom_call.1} parent=1 // pred_fallthru
      _
    // Predicated region
    $region22: #{tpu_custom_call.1} parent=1 // pred_check
      _
    $region23: #{tpu_custom_call.1} parent=1 // pred_check_branch
      %48 = sbr.rel (0) target = $region25
    $region24: #{tpu_custom_call.1} parent=1 // pred_region
      %49 = dma.done [#allocation6], 128
    $region25: #{tpu_custom_call.1} parent=1 // pred_fallthru
      _
    %v50 = vld [vmem:[#allocation2] sm:$0xff]
    %v51 = vld [vmem:[#allocation5] sm:$0xff]
    %v52 = vld [vmem:[#allocation7] sm:$0xff]
    %v53 = vsub.f32 %v50, %v51
    %v54 = vsub.f32 %v50, %v52
    %v55 = vmul.f32 %v53, %v53
    %v56 = vmul.f32 %v54, %v54
    %v57 = vsub.f32 %v55, %v56
    %58 = vadd.xlane.f32.xlu0 %v57
    %v59 = vpop.xlane.xlu0 %58
    %v60 = vadd.f32 %v59, 0.5
    %v61 = vmax.f32 %v60, 0.0
    %s62 = smul.u32 0, 8
    %v63 = vlaneseq
    %v64 = vshrl.u32 %v63, 7
    %v65 = vstv %s62
    %v66 = vadd.s32 %v65, %v64
    %vm67 = vcmp.lt.s32.totalorder %v66, 8
    %v68 = vsel %vm67, %v61, 0.0
    %vm69 = vcmask 7168
    %v70 = vsel %vm69, %v68, 0.0
    %71 = vadd.xlane.f32.xlu0 %v70
    %v72 = vpop.xlane.xlu0 %71
    %v73 = vrot.slane %v72, 4
    %v74 = vadd.f32 %v72, %v73
    %v75 = vrot.slane %v74, 2
    %v76 = vadd.f32 %v74, %v75
    %v77 = vrot.slane %v76, 1
    %v78 = vadd.f32 %v76, %v77
    %s79 = vtos %v78
    %v80 = vstv %s79
    %81 = vst [vmem:[#allocation8] sm:$0xff] %v80
    // Predicated region
    $region26: #{tpu_custom_call.1} parent=1 // pred_check
      _
    $region27: #{tpu_custom_call.1} parent=1 // pred_check_branch
      %83 = sbr.rel (0) target = $region29
    $region28: #{tpu_custom_call.1} parent=1 // pred_region
      %s85 = ssub.s32 128, 128
      %86 = vsyncadd [#allocation4], %s85
      %s88 = sshll.u32 [#allocation8], 4
      %s89 = int_to_ptr.vmem [resolvable:$true] %s88
      %91 = dma.vmem_to_hbm [thread:$0]  %s89, 128, %s3, [#allocation4]
    $region29: #{tpu_custom_call.1} parent=1 // pred_fallthru
      _
    // Predicated region
    $region30: #{tpu_custom_call.1} parent=1 // pred_check
      _
    $region31: #{tpu_custom_call.1} parent=1 // pred_check_branch
      %93 = sbr.rel (0) target = $region33
    $region32: #{tpu_custom_call.1} parent=1 // pred_region
      %94 = dma.done [#allocation4], 128
    $region33: #{tpu_custom_call.1} parent=1 // pred_fallthru
      _
    %95 = vsyncpa [#allocation3], 1
    %96 = vsyncpa [#allocation6], 1
    %97 = vsyncpa [#allocation4], 1

</llo_original>
